<compile_context>
chip_gen: v6e
topology: v6e:2x2x1
jax: 0.10.0
libtpu: 0.0.40
codegen_flags: <defaults>
</compile_context>

<pallas_src>
import jax
import jax.numpy as jnp
from jax.experimental import pallas as pl
from jax.experimental.pallas import tpu as pltpu

OUTPUT_SIZE = 4   # `output_size` is a free symbol in the reference code.
LANE_PAD = 8      # final-layer lane padding (block last dim == full array dim).


def _round_up(n, m):
    return ((n + m - 1) // m) * m


def _vmem_bytes(rows, cols, itemsize=4):
    # VMEM layout pads every block to (8, 128) tiles.
    return _round_up(max(int(rows), 1), 8) * _round_up(max(int(cols), 1), 128) * itemsize


def _mlp_kernel(x_ref,
                w1_ref, b1_ref,
                w2_ref, b2_ref,
                w3_ref, b3_ref,
                w4_ref, b4_ref,
                o_ref):
    # Whole 4-layer MLP fused per batch tile; f32 MXU accumulation throughout.
    x = x_ref[...]

    h = jnp.dot(x, w1_ref[...], preferred_element_type=jnp.float32) + b1_ref[...]
    h = jnp.maximum(h, 0.0)

    h = jnp.dot(h, w2_ref[...], preferred_element_type=jnp.float32) + b2_ref[...]
    h = jnp.maximum(h, 0.0)

    h = jnp.dot(h, w3_ref[...], preferred_element_type=jnp.float32) + b3_ref[...]
    h = jnp.maximum(h, 0.0)

    out = jnp.dot(h, w4_ref[...], preferred_element_type=jnp.float32) + b4_ref[...]
    o_ref[...] = out.astype(o_ref.dtype)


def init_params(key):
    """Deterministic init mimicking PyTorch Linear default U[-1/sqrt(in), 1/sqrt(in)].
    Weights stored transposed as (in, out); biases as (1, out)."""
    dims = [(8, 128), (128, 64), (64, 32), (32, OUTPUT_SIZE)]
    params = {}
    for idx, (d_in, d_out) in enumerate(dims, start=1):
        key, kw, kb = jax.random.split(key, 3)
        bound = 1.0 / (d_in ** 0.5)
        params[f"w{idx}"] = jax.random.uniform(
            kw, (d_in, d_out), jnp.float32, minval=-bound, maxval=bound)
        params[f"b{idx}"] = jax.random.uniform(
            kb, (1, d_out), jnp.float32, minval=-bound, maxval=bound)
    return params


def prepare_params(params, lane_pad=LANE_PAD):
    """One-time prep: zero-pad the last layer to `lane_pad` output columns so the
    kernel's output block is legal and stores stay cheap. Done once, not per call."""
    w4, b4 = params["w4"], params["b4"]
    d_out = w4.shape[1]
    d_pad = _round_up(max(d_out, lane_pad), lane_pad)
    prepped = dict(params)
    prepped["w4p"] = jnp.zeros((w4.shape[0], d_pad), w4.dtype).at[:, :d_out].set(w4)
    prepped["b4p"] = jnp.zeros((1, d_pad), b4.dtype).at[:, :d_out].set(b4)
    return prepped


def ann_reference(x, params):
    h = jnp.maximum(x @ params["w1"] + params["b1"], 0.0)
    h = jnp.maximum(h @ params["w2"] + params["b2"], 0.0)
    h = jnp.maximum(h @ params["w3"] + params["b3"], 0.0)
    return h @ params["w4"] + params["b4"]


def ann_forward(x, prepped, *, batch_tile=2048, small_batch_xla_threshold=1024):
    """x: (B, 8) float32.  prepped: output of prepare_params()."""
    B, D_in = x.shape
    assert D_in == 8

    w1, b1 = prepped["w1"], prepped["b1"]     # (8, 128),  (1, 128)
    w2, b2 = prepped["w2"], prepped["b2"]     # (128, 64), (1, 64)
    w3, b3 = prepped["w3"], prepped["b3"]     # (64, 32),  (1, 32)
    w4p, b4p = prepped["w4p"], prepped["b4p"]  # (32, d_pad), (1, d_pad)
    d_out = prepped["w4"].shape[1]
    d_pad = w4p.shape[1]

    # Small-batch fast path: launch + pipeline prologue dominate; let XLA fuse it.
    if B < small_batch_xla_threshold:
        return ann_reference(x, prepped)

    # --- Batch tiling ---------------------------------------------------------
    # Big tiles amortize the ~0.35us/step pipeline cost; cap at the 8-rounded
    # batch so small problems don't over-pad. Grid uses cdiv: the partial tail
    # block is handled by Pallas (OOB rows masked on store), so no jnp.pad of x.
    B8 = _round_up(B, 8)
    tile = int(min(batch_tile, B8))
    # v7x megacore: guarantee >= 2 grid steps for large batches so the
    # "parallel" axis actually uses both TensorCores.
    if B8 >= 2048 and pl.cdiv(B, tile) < 2:
        tile = int(_round_up(pl.cdiv(B8, 2), 8))
    grid = (pl.cdiv(B, tile),)

    full2d = lambda arr: pl.BlockSpec(arr.shape, lambda i: (0, 0))

    # --- Cost hint (actual widths, not padded compute) ------------------------
    flops = 2 * B * (8 * 128 + 128 * 64 + 64 * 32 + 32 * d_out)
    weight_hbm_bytes = sum(int(a.size) * a.dtype.itemsize
                           for a in (w1, b1, w2, b2, w3, b3, w4p, b4p))
    bytes_accessed = B * D_in * 4 + B * d_pad * 4 + weight_hbm_bytes

    # --- VMEM budget (lane/sublane-padded), generation-aware limit ------------
    weight_vmem = sum(_vmem_bytes(a.shape[0], a.shape[1], a.dtype.itemsize)
                      for a in (w1, b1, w2, b2, w3, b3, w4p, b4p))
    vmem_need = (2 * _vmem_bytes(tile, D_in)        # x double-buffer
                 + 2 * _vmem_bytes(tile, d_pad)     # output double-buffer
                 + 2 * weight_vmem                  # weight/bias buffers
                 + _vmem_bytes(tile, 128)           # activation temporaries
                 + _vmem_bytes(tile, 64)
                 + _vmem_bytes(tile, 32)
                 + (2 << 20))                       # slack for compiler scratch

    cp_kwargs = dict(dimension_semantics=("parallel",))
    if vmem_need > (12 << 20):      # v5e's default scoped VMEM limit is 16 MiB
        try:
            cap = int(pltpu.get_tpu_info().vmem_capacity_bytes) - (16 << 20)
        except Exception:
            cap = 48 << 20          # safe on v5e/v6e (128 MiB) and v7x (64 MiB)
        cap = max(cap, 16 << 20)
        cp_kwargs["vmem_limit_bytes"] = int(min(max(vmem_need, 16 << 20), cap))

    out = pl.pallas_call(
        _mlp_kernel,
        out_shape=jax.ShapeDtypeStruct((B, d_pad), x.dtype),
        grid=grid,
        in_specs=[
            pl.BlockSpec((tile, D_in), lambda i: (i, 0)),
            full2d(w1), full2d(b1),
            full2d(w2), full2d(b2),
            full2d(w3), full2d(b3),
            full2d(w4p), full2d(b4p),
        ],
        out_specs=pl.BlockSpec((tile, d_pad), lambda i: (i, 0)),
        compiler_params=pltpu.CompilerParams(**cp_kwargs),
        cost_estimate=pl.CostEstimate(
            flops=flops, transcendentals=0, bytes_accessed=bytes_accessed),
    )(x, w1, b1, w2, b2, w3, b3, w4p, b4p)

    # Drop the (at most lane_pad - d_out) zero output lanes.
    return out[:, :d_out]


if __name__ == "__main__":
    key = jax.random.PRNGKey(0)
    key, kx = jax.random.split(key)

    params = init_params(key)
    prepped = prepare_params(params)

    # 1) Small aligned batch, forced through the Pallas kernel.
    B = 16
    x = jax.random.normal(kx, (B, 8), jnp.float32)
    out = jax.block_until_ready(ann_forward(x, prepped, small_batch_xla_threshold=0))
    ref = ann_reference(x, params)
    assert out.shape == (B, OUTPUT_SIZE), out.shape
    assert jnp.allclose(out, ref, atol=1e-4, rtol=1e-4), "mismatch vs JAX reference"

    # 2) Ragged batch (not a multiple of 8) exercises the masked partial-block path.
    x2 = jax.random.normal(jax.random.PRNGKey(1), (10, 8), jnp.float32)
    out2 = jax.block_until_ready(ann_forward(x2, prepped, small_batch_xla_threshold=0))
    ref2 = ann_reference(x2, params)
    assert out2.shape == (10, OUTPUT_SIZE), out2.shape
    assert jnp.allclose(out2, ref2, atol=1e-4, rtol=1e-4), "mismatch (ragged batch)"

    # 3) Multi-step grid (>=2 steps / megacore) + partial tail tile, default path.
    x3 = jax.random.normal(jax.random.PRNGKey(2), (2056, 8), jnp.float32)
    out3 = jax.block_until_ready(ann_forward(x3, prepped))
    ref3 = ann_reference(x3, params)
    assert out3.shape == (2056, OUTPUT_SIZE), out3.shape
    assert jnp.allclose(out3, ref3, atol=1e-4, rtol=1e-4), "mismatch (large batch)"

    # 4) Tiny batch takes the XLA fast path by default.
    out4 = jax.block_until_ready(ann_forward(x, prepped))
    assert jnp.allclose(out4, ref, atol=1e-4, rtol=1e-4), "mismatch (fast path)"

    print("KERNEL_OK")
</pallas_src>

<mosaic_0001>
module attributes {stable_mosaic.version = 11 : i64} {
  func.func @_mlp_kernel(%arg0: i32, %arg1: memref<16x8xf32, #tpu.memory_space<vmem>>, %arg2: memref<8x128xf32, #tpu.memory_space<vmem>>, %arg3: memref<1x128xf32, #tpu.memory_space<vmem>>, %arg4: memref<128x64xf32, #tpu.memory_space<vmem>>, %arg5: memref<1x64xf32, #tpu.memory_space<vmem>>, %arg6: memref<64x32xf32, #tpu.memory_space<vmem>>, %arg7: memref<1x32xf32, #tpu.memory_space<vmem>>, %arg8: memref<32x8xf32, #tpu.memory_space<vmem>>, %arg9: memref<1x8xf32, #tpu.memory_space<vmem>>, %arg10: memref<16x8xf32, #tpu.memory_space<vmem>>) attributes {dimension_semantics = [#tpu.dimension_semantics<parallel>], iteration_bounds = array<i64: 1>, scalar_prefetch = 0 : i64, scratch_operands = 0 : i64, tpu.core_type = #tpu.core_type<tc>, window_params = [{transform_indices = @transform_0, window_bounds = array<i64: 16, 8>}, {pipeline_mode = #tpu.pipeline_mode<synchronous>, transform_indices = @transform_1, window_bounds = array<i64: 8, 128>}, {pipeline_mode = #tpu.pipeline_mode<synchronous>, transform_indices = @transform_2, window_bounds = array<i64: 1, 128>}, {pipeline_mode = #tpu.pipeline_mode<synchronous>, transform_indices = @transform_3, window_bounds = array<i64: 128, 64>}, {pipeline_mode = #tpu.pipeline_mode<synchronous>, transform_indices = @transform_4, window_bounds = array<i64: 1, 64>}, {pipeline_mode = #tpu.pipeline_mode<synchronous>, transform_indices = @transform_5, window_bounds = array<i64: 64, 32>}, {pipeline_mode = #tpu.pipeline_mode<synchronous>, transform_indices = @transform_6, window_bounds = array<i64: 1, 32>}, {pipeline_mode = #tpu.pipeline_mode<synchronous>, transform_indices = @transform_7, window_bounds = array<i64: 32, 8>}, {pipeline_mode = #tpu.pipeline_mode<synchronous>, transform_indices = @transform_8, window_bounds = array<i64: 1, 8>}, {transform_indices = @transform_9, window_bounds = array<i64: 16, 8>}]} {
    %c0 = arith.constant 0 : index
    %c0_0 = arith.constant 0 : index
    %0 = vector.load %arg1[%c0, %c0_0] : memref<16x8xf32, #tpu.memory_space<vmem>>, vector<16x8xf32>
    %c0_1 = arith.constant 0 : index
    %c0_2 = arith.constant 0 : index
    %1 = vector.load %arg2[%c0_1, %c0_2] : memref<8x128xf32, #tpu.memory_space<vmem>>, vector<8x128xf32>
    %cst = arith.constant dense<0.000000e+00> : vector<16x128xf32>
    %2 = tpu.matmul %0, %1, %cst {dimension_numbers = #tpu.dot_dimension_numbers<[1], [0], [0], [1], [0, 0, 1, 1], [], []>} : vector<16x8xf32>, vector<8x128xf32>, vector<16x128xf32> -> vector<16x128xf32>
    %c0_3 = arith.constant 0 : index
    %c0_4 = arith.constant 0 : index
    %3 = vector.load %arg3[%c0_3, %c0_4] : memref<1x128xf32, #tpu.memory_space<vmem>>, vector<1x128xf32>
    %4 = vector.broadcast %3 : vector<1x128xf32> to vector<16x128xf32>
    %5 = arith.addf %2, %4 : vector<16x128xf32>
    %cst_5 = arith.constant 0.000000e+00 : f32
    %6 = vector.broadcast %cst_5 : f32 to vector<16x128xf32>
    %7 = arith.maximumf %5, %6 : vector<16x128xf32>
    %c0_6 = arith.constant 0 : index
    %c0_7 = arith.constant 0 : index
    %8 = vector.load %arg4[%c0_6, %c0_7] : memref<128x64xf32, #tpu.memory_space<vmem>>, vector<128x64xf32>
    %cst_8 = arith.constant dense<0.000000e+00> : vector<16x64xf32>
    %9 = tpu.matmul %7, %8, %cst_8 {dimension_numbers = #tpu.dot_dimension_numbers<[1], [0], [0], [1], [0, 0, 1, 1], [], []>} : vector<16x128xf32>, vector<128x64xf32>, vector<16x64xf32> -> vector<16x64xf32>
    %c0_9 = arith.constant 0 : index
    %c0_10 = arith.constant 0 : index
    %10 = vector.load %arg5[%c0_9, %c0_10] : memref<1x64xf32, #tpu.memory_space<vmem>>, vector<1x64xf32>
    %11 = vector.broadcast %10 : vector<1x64xf32> to vector<16x64xf32>
    %12 = arith.addf %9, %11 : vector<16x64xf32>
    %cst_11 = arith.constant 0.000000e+00 : f32
    %13 = vector.broadcast %cst_11 : f32 to vector<16x64xf32>
    %14 = arith.maximumf %12, %13 : vector<16x64xf32>
    %c0_12 = arith.constant 0 : index
    %c0_13 = arith.constant 0 : index
    %15 = vector.load %arg6[%c0_12, %c0_13] : memref<64x32xf32, #tpu.memory_space<vmem>>, vector<64x32xf32>
    %cst_14 = arith.constant dense<0.000000e+00> : vector<16x32xf32>
    %16 = tpu.matmul %14, %15, %cst_14 {dimension_numbers = #tpu.dot_dimension_numbers<[1], [0], [0], [1], [0, 0, 1, 1], [], []>} : vector<16x64xf32>, vector<64x32xf32>, vector<16x32xf32> -> vector<16x32xf32>
    %c0_15 = arith.constant 0 : index
    %c0_16 = arith.constant 0 : index
    %17 = vector.load %arg7[%c0_15, %c0_16] : memref<1x32xf32, #tpu.memory_space<vmem>>, vector<1x32xf32>
    %18 = vector.broadcast %17 : vector<1x32xf32> to vector<16x32xf32>
    %19 = arith.addf %16, %18 : vector<16x32xf32>
    %cst_17 = arith.constant 0.000000e+00 : f32
    %20 = vector.broadcast %cst_17 : f32 to vector<16x32xf32>
    %21 = arith.maximumf %19, %20 : vector<16x32xf32>
    %c0_18 = arith.constant 0 : index
    %c0_19 = arith.constant 0 : index
    %22 = vector.load %arg8[%c0_18, %c0_19] : memref<32x8xf32, #tpu.memory_space<vmem>>, vector<32x8xf32>
    %cst_20 = arith.constant dense<0.000000e+00> : vector<16x8xf32>
    %23 = tpu.matmul %21, %22, %cst_20 {dimension_numbers = #tpu.dot_dimension_numbers<[1], [0], [0], [1], [0, 0, 1, 1], [], []>} : vector<16x32xf32>, vector<32x8xf32>, vector<16x8xf32> -> vector<16x8xf32>
    %c0_21 = arith.constant 0 : index
    %c0_22 = arith.constant 0 : index
    %24 = vector.load %arg9[%c0_21, %c0_22] : memref<1x8xf32, #tpu.memory_space<vmem>>, vector<1x8xf32>
    %25 = vector.broadcast %24 : vector<1x8xf32> to vector<16x8xf32>
    %26 = arith.addf %23, %25 : vector<16x8xf32>
    %c0_23 = arith.constant 0 : index
    %c0_24 = arith.constant 0 : index
    %27 = vector.load %arg10[%c0_23, %c0_24] : memref<16x8xf32, #tpu.memory_space<vmem>>, vector<16x8xf32>
    tpu.vector_store %arg10[%c0_23, %c0_24], %26 {strides = array<i32>} : memref<16x8xf32, #tpu.memory_space<vmem>>, vector<16x8xf32>,
    return
  }
  func.func @transform_0(%arg0: i32) -> (i32, i32) {
    %c0_i32 = arith.constant 0 : i32
    %c0_i32_0 = arith.constant 0 : i32
    return %arg0, %c0_i32 : i32, i32
  }
  func.func @transform_1(%arg0: i32) -> (i32, i32) {
    %c0_i32 = arith.constant 0 : i32
    %c0_i32_0 = arith.constant 0 : i32
    %c0_i32_1 = arith.constant 0 : i32
    return %c0_i32, %c0_i32_0 : i32, i32
  }
  func.func @transform_2(%arg0: i32) -> (i32, i32) {
    %c0_i32 = arith.constant 0 : i32
    %c0_i32_0 = arith.constant 0 : i32
    %c0_i32_1 = arith.constant 0 : i32
    return %c0_i32, %c0_i32_0 : i32, i32
  }
  func.func @transform_3(%arg0: i32) -> (i32, i32) {
    %c0_i32 = arith.constant 0 : i32
    %c0_i32_0 = arith.constant 0 : i32
    %c0_i32_1 = arith.constant 0 : i32
    return %c0_i32, %c0_i32_0 : i32, i32
  }
  func.func @transform_4(%arg0: i32) -> (i32, i32) {
    %c0_i32 = arith.constant 0 : i32
    %c0_i32_0 = arith.constant 0 : i32
    %c0_i32_1 = arith.constant 0 : i32
    return %c0_i32, %c0_i32_0 : i32, i32
  }
  func.func @transform_5(%arg0: i32) -> (i32, i32) {
    %c0_i32 = arith.constant 0 : i32
    %c0_i32_0 = arith.constant 0 : i32
    %c0_i32_1 = arith.constant 0 : i32
    return %c0_i32, %c0_i32_0 : i32, i32
  }
  func.func @transform_6(%arg0: i32) -> (i32, i32) {
    %c0_i32 = arith.constant 0 : i32
    %c0_i32_0 = arith.constant 0 : i32
    %c0_i32_1 = arith.constant 0 : i32
    return %c0_i32, %c0_i32_0 : i32, i32
  }
  func.func @transform_7(%arg0: i32) -> (i32, i32) {
    %c0_i32 = arith.constant 0 : i32
    %c0_i32_0 = arith.constant 0 : i32
    %c0_i32_1 = arith.constant 0 : i32
    return %c0_i32, %c0_i32_0 : i32, i32
  }
  func.func @transform_8(%arg0: i32) -> (i32, i32) {
    %c0_i32 = arith.constant 0 : i32
    %c0_i32_0 = arith.constant 0 : i32
    %c0_i32_1 = arith.constant 0 : i32
    return %c0_i32, %c0_i32_0 : i32, i32
  }
  func.func @transform_9(%arg0: i32) -> (i32, i32) {
    %c0_i32 = arith.constant 0 : i32
    %c0_i32_0 = arith.constant 0 : i32
    return %arg0, %c0_i32 : i32, i32
  }
}

</mosaic_0001>

<llo_original>
// kernel: tpu_custom_call.1
$region0: #{tpu_custom_call.1}
  #allocation0 [shape = 'u32[]', space=smem, size = 0x4, offset = 0x4, fixed_abs, tag = 'smem constant byte address 0x4 - core index']
  #allocation1 [shape = 'u32[144,128]{1,0:T(1,128)}', space=vmem, size = 0x12000, scoped, tag = 'internal scratch']
  %s0 = inlined_call_operand.vmem [shape: f32[16,8], index: 0, kind: input, shape index: {}]
  %s1 = inlined_call_operand.vmem [shape: f32[8,128], index: 1, kind: input, shape index: {}]
  %s2 = inlined_call_operand.vmem [shape: f32[1,128], index: 2, kind: input, shape index: {}]
  %s3 = inlined_call_operand.vmem [shape: f32[128,64], index: 3, kind: input, shape index: {}]
  %s4 = inlined_call_operand.vmem [shape: f32[1,64], index: 4, kind: input, shape index: {}]
  %s5 = inlined_call_operand.vmem [shape: f32[64,32], index: 5, kind: input, shape index: {}]
  %s6 = inlined_call_operand.vmem [shape: f32[1,32], index: 6, kind: input, shape index: {}]
  %s7 = inlined_call_operand.vmem [shape: f32[32,8], index: 7, kind: input, shape index: {}]
  %s8 = inlined_call_operand.vmem [shape: f32[1,8], index: 8, kind: input, shape index: {}]
  %s9 = inlined_call_operand.vmem [shape: f32[16,8], index: 9, kind: output, shape index: {}]
  %s10 = sld [smem:[#allocation0]]
  $region46: #{tpu_custom_call.1} parent=0
    _
  %s12 = ssub.s32 1, %s10
  %s13 = scalar_select 0, %s12, %s10
  // Predicated region
  $region2: #{tpu_custom_call.1} parent=0 // pred_check
    _
  $region3: #{tpu_custom_call.1} parent=0 // pred_check_branch
    %15 = sbr.rel (0) target = $region5
  $region4: #{tpu_custom_call.1} parent=0 // pred_region
    _
  $region5: #{tpu_custom_call.1} parent=0 // pred_fallthru
    _
  // Predicated region
  $region6: #{tpu_custom_call.1} parent=0 // pred_check
    _
  $region7: #{tpu_custom_call.1} parent=0 // pred_check_branch
    %17 = sbr.rel (0) target = $region9
  $region8: #{tpu_custom_call.1} parent=0 // pred_region
    _
  $region9: #{tpu_custom_call.1} parent=0 // pred_fallthru
    _
  // Predicated region
  $region10: #{tpu_custom_call.1} parent=0 // pred_check
    _
  $region11: #{tpu_custom_call.1} parent=0 // pred_check_branch
    %19 = sbr.rel (0) target = $region13
  $region12: #{tpu_custom_call.1} parent=0 // pred_region
    _
  $region13: #{tpu_custom_call.1} parent=0 // pred_fallthru
    _
  // Predicated region
  $region14: #{tpu_custom_call.1} parent=0 // pred_check
    _
  $region15: #{tpu_custom_call.1} parent=0 // pred_check_branch
    %21 = sbr.rel (0) target = $region17
  $region16: #{tpu_custom_call.1} parent=0 // pred_region
    _
  $region17: #{tpu_custom_call.1} parent=0 // pred_fallthru
    _
  // Predicated region
  $region18: #{tpu_custom_call.1} parent=0 // pred_check
    _
  $region19: #{tpu_custom_call.1} parent=0 // pred_check_branch
    %23 = sbr.rel (0) target = $region21
  $region20: #{tpu_custom_call.1} parent=0 // pred_region
    _
  $region21: #{tpu_custom_call.1} parent=0 // pred_fallthru
    _
  // Predicated region
  $region22: #{tpu_custom_call.1} parent=0 // pred_check
    _
  $region23: #{tpu_custom_call.1} parent=0 // pred_check_branch
    %25 = sbr.rel (0) target = $region25
  $region24: #{tpu_custom_call.1} parent=0 // pred_region
    _
  $region25: #{tpu_custom_call.1} parent=0 // pred_fallthru
    _
  // Predicated region
  $region26: #{tpu_custom_call.1} parent=0 // pred_check
    _
  $region27: #{tpu_custom_call.1} parent=0 // pred_check_branch
    %27 = sbr.rel (0) target = $region29
  $region28: #{tpu_custom_call.1} parent=0 // pred_region
    _
  $region29: #{tpu_custom_call.1} parent=0 // pred_fallthru
    _
  // Predicated region
  $region30: #{tpu_custom_call.1} parent=0 // pred_check
    _
  $region31: #{tpu_custom_call.1} parent=0 // pred_check_branch
    %29 = sbr.rel (0) target = $region33
  $region32: #{tpu_custom_call.1} parent=0 // pred_region
    _
  $region33: #{tpu_custom_call.1} parent=0 // pred_fallthru
    _
  // Predicated region
  $region34: #{tpu_custom_call.1} parent=0 // pred_check
    _
  $region35: #{tpu_custom_call.1} parent=0 // pred_check_branch
    %31 = sbr.rel (0) target = $region37
  $region36: #{tpu_custom_call.1} parent=0 // pred_region
    _
  $region37: #{tpu_custom_call.1} parent=0 // pred_fallthru
    _
  %v32 = vld [vmem:[%s0] sm:$0xff]
  %v33 = vld [vmem:[%s0 + $0x8] sm:$0xff]
  %v34 = vld [vmem:[%s1] sm:$0xff]
  %v35 = vld [vmem:[%s2] sm:$0x1]
  %v37 = vlaneseq
  %v38 = vshrl.u32 %v37, 7
  %v39 = vsub.s32 0, %v38
  %v40 = vrot.slane %v35, %v39
  %vm42 = vcmask 64512
  %v44 = vsel %vm42, %v32, 0
  %v47 = vsel %vm42, %v33, 0
  %49 = vmatprep.subr.mxu0 0.0
  %50 = vmatpush1.msra.mxu0 0.0
  %51 = vmatprep.subr.mxu0 0.0
  %52 = vmatpush1.msra.mxu0 0.0
  %53 = vmatprep.subr.mxu0 0.0
  %54 = vmatpush1.msra.mxu0 0.0
  %55 = vmatprep.subr.mxu0 0.0
  %56 = vmatpush1.msra.mxu0 0.0
  %57 = vmatprep.subr.mxu0 0.0
  %58 = vmatpush1.msra.mxu0 0.0
  %59 = vmatprep.subr.mxu0 0.0
  %60 = vmatpush1.msra.mxu0 0.0
  %61 = vmatprep.subr.mxu0 0.0
  %62 = vmatpush1.msra.mxu0 0.0
  %63 = vmatprep.subr.mxu0 0.0
  %64 = vmatpush1.msra.mxu0 0.0
  %65 = vmatprep.subr.mxu0 0.0
  %66 = vmatpush1.msra.mxu0 0.0
  %67 = vmatprep.subr.mxu0 0.0
  %68 = vmatpush1.msra.mxu0 0.0
  %69 = vmatprep.subr.mxu0 0.0
  %70 = vmatpush1.msra.mxu0 0.0
  %71 = vmatprep.subr.mxu0 0.0
  %72 = vmatpush1.msra.mxu0 0.0
  %73 = vmatprep.subr.mxu0 0.0
  %74 = vmatpush1.msra.mxu0 0.0
  %75 = vmatprep.subr.mxu0 0.0
  %76 = vmatpush1.msra.mxu0 0.0
  %77 = vmatprep.subr.mxu0 0.0
  %78 = vmatpush1.msra.mxu0 0.0
  %79 = vmatprep.subr.mxu0 0.0
  %80 = vmatpush1.msra.mxu0 %v34
  %81 = vmatprep.subr.mxu0 0.0
  %82 = vmatpush2.msra.mxu0 0.0
  %83 = vmatprep.subr.mxu0 0.0
  %84 = vmatpush2.msra.mxu0 0.0
  %85 = vmatprep.subr.mxu0 0.0
  %86 = vmatpush2.msra.mxu0 0.0
  %87 = vmatprep.subr.mxu0 0.0
  %88 = vmatpush2.msra.mxu0 0.0
  %89 = vmatprep.subr.mxu0 0.0
  %90 = vmatpush2.msra.mxu0 0.0
  %91 = vmatprep.subr.mxu0 0.0
  %92 = vmatpush2.msra.mxu0 0.0
  %93 = vmatprep.subr.mxu0 0.0
  %94 = vmatpush2.msra.mxu0 0.0
  %95 = vmatprep.subr.mxu0 0.0
  %96 = vmatpush2.msra.mxu0 0.0
  %97 = vmatprep.subr.mxu0 0.0
  %98 = vmatpush2.msra.mxu0 0.0
  %99 = vmatprep.subr.mxu0 0.0
  %100 = vmatpush2.msra.mxu0 0.0
  %101 = vmatprep.subr.mxu0 0.0
  %102 = vmatpush2.msra.mxu0 0.0
  %103 = vmatprep.subr.mxu0 0.0
  %104 = vmatpush2.msra.mxu0 0.0
  %105 = vmatprep.subr.mxu0 0.0
  %106 = vmatpush2.msra.mxu0 0.0
  %107 = vmatprep.subr.mxu0 0.0
  %108 = vmatpush2.msra.mxu0 0.0
  %109 = vmatprep.subr.mxu0 0.0
  %110 = vmatpush2.msra.mxu0 0.0
  %111 = vmatprep.subr.mxu0 0.0
  %112 = vmatpush2.msra.mxu0 0.0
  %113 = vmatprep.mubr.f32.mxu0 0.0
  %114 = vmatmul.mubr.f32.gmra.mxu0 %v44
  %v115 = vpop.f32.mrf.mxu0
  %v116 = vadd.f32 %v40, %v115
  %v117 = vpop.f32.mrf.mxu0
  %118 = vmatprep.mubr.f32.mxu0 0.0
  %119 = vmatmul.mubr.f32.gmra.mxu0 %v47
  %v120 = vpop.f32.mrf.mxu0
  %v121 = vadd.f32 %v40, %v120
  %v122 = vpop.f32.mrf.mxu0
  %123 = vdwg.mxu0
  %v124 = vmax.f32 %v116, 0.0
  %v125 = vmax.f32 %v121, 0.0
  %v126 = vld [vmem:[%s3] sm:$0xff]
  %v127 = vld [vmem:[%s3 + $0x8] sm:$0xff]
  %v128 = vld [vmem:[%s3 + $0x10] sm:$0xff]
  %v129 = vld [vmem:[%s3 + $0x18] sm:$0xff]
  %v130 = vld [vmem:[%s3 + $0x20] sm:$0xff]
  %v131 = vld [vmem:[%s3 + $0x28] sm:$0xff]
  %v132 = vld [vmem:[%s3 + $0x30] sm:$0xff]
  %v133 = vld [vmem:[%s3 + $0x38] sm:$0xff]
  %v134 = vld [vmem:[%s3 + $0x40] sm:$0xff]
  %v135 = vld [vmem:[%s3 + $0x48] sm:$0xff]
  %v136 = vld [vmem:[%s3 + $0x50] sm:$0xff]
  %v137 = vld [vmem:[%s3 + $0x58] sm:$0xff]
  %v138 = vld [vmem:[%s3 + $0x60] sm:$0xff]
  %v139 = vld [vmem:[%s3 + $0x68] sm:$0xff]
  %v140 = vld [vmem:[%s3 + $0x70] sm:$0xff]
  %v141 = vld [vmem:[%s3 + $0x78] sm:$0xff]
  %v142 = vld [vmem:[%s4] sm:$0x1]
  %v144 = vlaneseq
  %v145 = vshrl.u32 %v144, 7
  %v146 = vsub.s32 0, %v145
  %v147 = vrot.slane %v142, %v146
  %149 = vmatprep.subr.mxu0 0.0
  %150 = vmatpush1.msra.mxu0 %v141
  %151 = vmatprep.subr.mxu0 0.0
  %152 = vmatpush1.msra.mxu0 %v140
  %153 = vmatprep.subr.mxu0 0.0
  %154 = vmatpush1.msra.mxu0 %v139
  %155 = vmatprep.subr.mxu0 0.0
  %156 = vmatpush1.msra.mxu0 %v138
  %157 = vmatprep.subr.mxu0 0.0
  %158 = vmatpush1.msra.mxu0 %v137
  %159 = vmatprep.subr.mxu0 0.0
  %160 = vmatpush1.msra.mxu0 %v136
  %161 = vmatprep.subr.mxu0 0.0
  %162 = vmatpush1.msra.mxu0 %v135
  %163 = vmatprep.subr.mxu0 0.0
  %164 = vmatpush1.msra.mxu0 %v134
  %165 = vmatprep.subr.mxu0 0.0
  %166 = vmatpush1.msra.mxu0 %v133
  %167 = vmatprep.subr.mxu0 0.0
  %168 = vmatpush1.msra.mxu0 %v132
  %169 = vmatprep.subr.mxu0 0.0
  %170 = vmatpush1.msra.mxu0 %v131
  %171 = vmatprep.subr.mxu0 0.0
  %172 = vmatpush1.msra.mxu0 %v130
  %173 = vmatprep.subr.mxu0 0.0
  %174 = vmatpush1.msra.mxu0 %v129
  %175 = vmatprep.subr.mxu0 0.0
  %176 = vmatpush1.msra.mxu0 %v128
  %177 = vmatprep.subr.mxu0 0.0
  %178 = vmatpush1.msra.mxu0 %v127
  %179 = vmatprep.subr.mxu0 0.0
  %180 = vmatpush1.msra.mxu0 %v126
  %181 = vmatprep.subr.mxu0 0.0
  %182 = vmatpush2.msra.mxu0 0.0
  %183 = vmatprep.subr.mxu0 0.0
  %184 = vmatpush2.msra.mxu0 0.0
  %185 = vmatprep.subr.mxu0 0.0
  %186 = vmatpush2.msra.mxu0 0.0
  %187 = vmatprep.subr.mxu0 0.0
  %188 = vmatpush2.msra.mxu0 0.0
  %189 = vmatprep.subr.mxu0 0.0
  %190 = vmatpush2.msra.mxu0 0.0
  %191 = vmatprep.subr.mxu0 0.0
  %192 = vmatpush2.msra.mxu0 0.0
  %193 = vmatprep.subr.mxu0 0.0
  %194 = vmatpush2.msra.mxu0 0.0
  %195 = vmatprep.subr.mxu0 0.0
  %196 = vmatpush2.msra.mxu0 0.0
  %197 = vmatprep.subr.mxu0 0.0
  %198 = vmatpush2.msra.mxu0 0.0
  %199 = vmatprep.subr.mxu0 0.0
  %200 = vmatpush2.msra.mxu0 0.0
  %201 = vmatprep.subr.mxu0 0.0
  %202 = vmatpush2.msra.mxu0 0.0
  %203 = vmatprep.subr.mxu0 0.0
  %204 = vmatpush2.msra.mxu0 0.0
  %205 = vmatprep.subr.mxu0 0.0
  %206 = vmatpush2.msra.mxu0 0.0
  %207 = vmatprep.subr.mxu0 0.0
  %208 = vmatpush2.msra.mxu0 0.0
  %209 = vmatprep.subr.mxu0 0.0
  %210 = vmatpush2.msra.mxu0 0.0
  %211 = vmatprep.subr.mxu0 0.0
  %212 = vmatpush2.msra.mxu0 0.0
  %213 = vmatprep.mubr.f32.mxu0 0.0
  %214 = vmatmul.mubr.f32.gmra.mxu0 %v124
  %v215 = vpop.f32.mrf.mxu0
  %v216 = vadd.f32 %v147, %v215
  %v217 = vpop.f32.mrf.mxu0
  %218 = vmatprep.mubr.f32.mxu0 0.0
  %219 = vmatmul.mubr.f32.gmra.mxu0 %v125
  %v220 = vpop.f32.mrf.mxu0
  %v221 = vadd.f32 %v147, %v220
  %v222 = vpop.f32.mrf.mxu0
  %223 = vdwg.mxu0
  %v224 = vmax.f32 %v216, 0.0
  %v225 = vmax.f32 %v221, 0.0
  %v226 = vld [vmem:[%s5] sm:$0xff]
  %v227 = vld [vmem:[%s5 + $0x8] sm:$0xff]
  %v228 = vld [vmem:[%s5 + $0x10] sm:$0xff]
  %v229 = vld [vmem:[%s5 + $0x18] sm:$0xff]
  %v230 = vld [vmem:[%s5 + $0x20] sm:$0xff]
  %v231 = vld [vmem:[%s5 + $0x28] sm:$0xff]
  %v232 = vld [vmem:[%s5 + $0x30] sm:$0xff]
  %v233 = vld [vmem:[%s5 + $0x38] sm:$0xff]
  %v234 = vld [vmem:[%s6] sm:$0x1]
  %v236 = vlaneseq
  %v237 = vshrl.u32 %v236, 7
  %v238 = vsub.s32 0, %v237
  %v239 = vrot.slane %v234, %v238
  %vm241 = vcmask 523264
  %v243 = vsel %vm241, %v224, 0
  %v246 = vsel %vm241, %v225, 0
  %248 = vmatprep.subr.mxu0 0.0
  %249 = vmatpush1.msra.mxu0 0.0
  %250 = vmatprep.subr.mxu0 0.0
  %251 = vmatpush1.msra.mxu0 0.0
  %252 = vmatprep.subr.mxu0 0.0
  %253 = vmatpush1.msra.mxu0 0.0
  %254 = vmatprep.subr.mxu0 0.0
  %255 = vmatpush1.msra.mxu0 0.0
  %256 = vmatprep.subr.mxu0 0.0
  %257 = vmatpush1.msra.mxu0 0.0
  %258 = vmatprep.subr.mxu0 0.0
  %259 = vmatpush1.msra.mxu0 0.0
  %260 = vmatprep.subr.mxu0 0.0
  %261 = vmatpush1.msra.mxu0 0.0
  %262 = vmatprep.subr.mxu0 0.0
  %263 = vmatpush1.msra.mxu0 0.0
  %264 = vmatprep.subr.mxu0 0.0
  %265 = vmatpush1.msra.mxu0 %v233
  %266 = vmatprep.subr.mxu0 0.0
  %267 = vmatpush1.msra.mxu0 %v232
  %268 = vmatprep.subr.mxu0 0.0
  %269 = vmatpush1.msra.mxu0 %v231
  %270 = vmatprep.subr.mxu0 0.0
  %271 = vmatpush1.msra.mxu0 %v230
  %272 = vmatprep.subr.mxu0 0.0
  %273 = vmatpush1.msra.mxu0 %v229
  %274 = vmatprep.subr.mxu0 0.0
  %275 = vmatpush1.msra.mxu0 %v228
  %276 = vmatprep.subr.mxu0 0.0
  %277 = vmatpush1.msra.mxu0 %v227
  %278 = vmatprep.subr.mxu0 0.0
  %279 = vmatpush1.msra.mxu0 %v226
  %280 = vmatprep.subr.mxu0 0.0
  %281 = vmatpush2.msra.mxu0 0.0
  %282 = vmatprep.subr.mxu0 0.0
  %283 = vmatpush2.msra.mxu0 0.0
  %284 = vmatprep.subr.mxu0 0.0
  %285 = vmatpush2.msra.mxu0 0.0
  %286 = vmatprep.subr.mxu0 0.0
  %287 = vmatpush2.msra.mxu0 0.0
  %288 = vmatprep.subr.mxu0 0.0
  %289 = vmatpush2.msra.mxu0 0.0
  %290 = vmatprep.subr.mxu0 0.0
  %291 = vmatpush2.msra.mxu0 0.0
  %292 = vmatprep.subr.mxu0 0.0
  %293 = vmatpush2.msra.mxu0 0.0
  %294 = vmatprep.subr.mxu0 0.0
  %295 = vmatpush2.msra.mxu0 0.0
  %296 = vmatprep.subr.mxu0 0.0
  %297 = vmatpush2.msra.mxu0 0.0
  %298 = vmatprep.subr.mxu0 0.0
  %299 = vmatpush2.msra.mxu0 0.0
  %300 = vmatprep.subr.mxu0 0.0
  %301 = vmatpush2.msra.mxu0 0.0
  %302 = vmatprep.subr.mxu0 0.0
  %303 = vmatpush2.msra.mxu0 0.0
  %304 = vmatprep.subr.mxu0 0.0
  %305 = vmatpush2.msra.mxu0 0.0
  %306 = vmatprep.subr.mxu0 0.0
  %307 = vmatpush2.msra.mxu0 0.0
  %308 = vmatprep.subr.mxu0 0.0
  %309 = vmatpush2.msra.mxu0 0.0
  %310 = vmatprep.subr.mxu0 0.0
  %311 = vmatpush2.msra.mxu0 0.0
  %312 = vmatprep.mubr.f32.mxu0 0.0
  %313 = vmatmul.mubr.f32.gmra.mxu0 %v243
  %v314 = vpop.f32.mrf.mxu0
  %v315 = vadd.f32 %v239, %v314
  %v316 = vpop.f32.mrf.mxu0
  %317 = vmatprep.mubr.f32.mxu0 0.0
  %318 = vmatmul.mubr.f32.gmra.mxu0 %v246
  %v319 = vpop.f32.mrf.mxu0
  %v320 = vadd.f32 %v239, %v319
  %v321 = vpop.f32.mrf.mxu0
  %322 = vdwg.mxu0
  %v323 = vmax.f32 %v315, 0.0
  %v324 = vmax.f32 %v320, 0.0
  %v325 = vld [vmem:[%s7] sm:$0xff]
  %v326 = vld [vmem:[%s7 + $0x8] sm:$0xff]
  %v327 = vld [vmem:[%s7 + $0x10] sm:$0xff]
  %v328 = vld [vmem:[%s7 + $0x18] sm:$0xff]
  %v329 = vld [vmem:[%s8] sm:$0x1]
  %v331 = vlaneseq
  %v332 = vshrl.u32 %v331, 7
  %v333 = vsub.s32 0, %v332
  %v334 = vrot.slane %v329, %v333
  %vm336 = vcmask 261120
  %v338 = vsel %vm336, %v323, 0
  %v341 = vsel %vm336, %v324, 0
  %343 = vmatprep.subr.mxu0 0.0
  %344 = vmatpush1.msra.mxu0 0.0
  %345 = vmatprep.subr.mxu0 0.0
  %346 = vmatpush1.msra.mxu0 0.0
  %347 = vmatprep.subr.mxu0 0.0
  %348 = vmatpush1.msra.mxu0 0.0
  %349 = vmatprep.subr.mxu0 0.0
  %350 = vmatpush1.msra.mxu0 0.0
  %351 = vmatprep.subr.mxu0 0.0
  %352 = vmatpush1.msra.mxu0 0.0
  %353 = vmatprep.subr.mxu0 0.0
  %354 = vmatpush1.msra.mxu0 0.0
  %355 = vmatprep.subr.mxu0 0.0
  %356 = vmatpush1.msra.mxu0 0.0
  %357 = vmatprep.subr.mxu0 0.0
  %358 = vmatpush1.msra.mxu0 0.0
  %359 = vmatprep.subr.mxu0 0.0
  %360 = vmatpush1.msra.mxu0 0.0
  %361 = vmatprep.subr.mxu0 0.0
  %362 = vmatpush1.msra.mxu0 0.0
  %363 = vmatprep.subr.mxu0 0.0
  %364 = vmatpush1.msra.mxu0 0.0
  %365 = vmatprep.subr.mxu0 0.0
  %366 = vmatpush1.msra.mxu0 0.0
  %367 = vmatprep.subr.mxu0 0.0
  %368 = vmatpush1.msra.mxu0 %v328
  %369 = vmatprep.subr.mxu0 0.0
  %370 = vmatpush1.msra.mxu0 %v327
  %371 = vmatprep.subr.mxu0 0.0
  %372 = vmatpush1.msra.mxu0 %v326
  %373 = vmatprep.subr.mxu0 0.0
  %374 = vmatpush1.msra.mxu0 %v325
  %375 = vmatprep.subr.mxu0 0.0
  %376 = vmatpush2.msra.mxu0 0.0
  %377 = vmatprep.subr.mxu0 0.0
  %378 = vmatpush2.msra.mxu0 0.0
  %379 = vmatprep.subr.mxu0 0.0
  %380 = vmatpush2.msra.mxu0 0.0
  %381 = vmatprep.subr.mxu0 0.0
  %382 = vmatpush2.msra.mxu0 0.0
  %383 = vmatprep.subr.mxu0 0.0
  %384 = vmatpush2.msra.mxu0 0.0
  %385 = vmatprep.subr.mxu0 0.0
  %386 = vmatpush2.msra.mxu0 0.0
  %387 = vmatprep.subr.mxu0 0.0
  %388 = vmatpush2.msra.mxu0 0.0
  %389 = vmatprep.subr.mxu0 0.0
  %390 = vmatpush2.msra.mxu0 0.0
  %391 = vmatprep.subr.mxu0 0.0
  %392 = vmatpush2.msra.mxu0 0.0
  %393 = vmatprep.subr.mxu0 0.0
  %394 = vmatpush2.msra.mxu0 0.0
  %395 = vmatprep.subr.mxu0 0.0
  %396 = vmatpush2.msra.mxu0 0.0
  %397 = vmatprep.subr.mxu0 0.0
  %398 = vmatpush2.msra.mxu0 0.0
  %399 = vmatprep.subr.mxu0 0.0
  %400 = vmatpush2.msra.mxu0 0.0
  %401 = vmatprep.subr.mxu0 0.0
  %402 = vmatpush2.msra.mxu0 0.0
  %403 = vmatprep.subr.mxu0 0.0
  %404 = vmatpush2.msra.mxu0 0.0
  %405 = vmatprep.subr.mxu0 0.0
  %406 = vmatpush2.msra.mxu0 0.0
  %407 = vmatprep.mubr.f32.mxu0 0.0
  %408 = vmatmul.mubr.f32.gmra.mxu0 %v338
  %v409 = vpop.f32.mrf.mxu0
  %v410 = vadd.f32 %v334, %v409
  %v411 = vpop.f32.mrf.mxu0
  %412 = vmatprep.mubr.f32.mxu0 0.0
  %413 = vmatmul.mubr.f32.gmra.mxu0 %v341
  %v414 = vpop.f32.mrf.mxu0
  %v415 = vadd.f32 %v334, %v414
  %v416 = vpop.f32.mrf.mxu0
  %417 = vdwg.mxu0
  %418 = vst.msk [vmem:[%s9] sm:$0xff] %vm42, %v410
  %419 = vst.msk [vmem:[%s9 + $0x8] sm:$0xff] %vm42, %v415
  // Predicated region
  $region38: #{tpu_custom_call.1} parent=0 // pred_check
    _
  $region39: #{tpu_custom_call.1} parent=0 // pred_check_branch
    %421 = sbr.rel (0) target = $region41
  $region40: #{tpu_custom_call.1} parent=0 // pred_region
    _
  $region41: #{tpu_custom_call.1} parent=0 // pred_fallthru
    _
  // Predicated region
  $region42: #{tpu_custom_call.1} parent=0 // pred_check
    _
  $region43: #{tpu_custom_call.1} parent=0 // pred_check_branch
    %423 = sbr.rel (0) target = $region45
  $region44: #{tpu_custom_call.1} parent=0 // pred_region
    _
  $region45: #{tpu_custom_call.1} parent=0 // pred_fallthru
    _

</llo_original>
